<compile_context>
chip_gen: v6e
topology: v6e:2x2x1
jax: 0.10.0
libtpu: 0.0.40
codegen_flags: <defaults>
</compile_context>

<pallas_src>
import jax
import jax.numpy as jnp
from jax.experimental import pallas as pl
from jax.experimental.pallas import tpu as pltpu

NUM_CLASSES = 10
K_IN = 28 * 28        # 784 — full last dim of x; legal block width with no padding
H1 = 128
H2_RAW = 64
H2_PAD = 128          # fc2 padded to a full 128-lane vreg (zero cols; exact)
NC_PAD = 16           # logits padded 10 -> 16 lanes (64 B/row output instead of 512)
TB_CAP = 3072         # rows per batch tile (~9.4 MB f32 x per step; peak VMEM ~30 MB)


def _round_up(n, m):
    return ((n + m - 1) // m) * m


def _cdiv(a, b):
    return (a + b - 1) // b


def mlp_kernel(x_ref, w1_ref, b1_ref, w2_ref, b2_ref, w3_ref, b3_ref, o_ref):
    # Cast the streamed f32 x tile to bf16 on-core (VPU filler; kernel is HBM-bound).
    xb = x_ref[...].astype(jnp.bfloat16)
    # fc1 + ReLU (bf16 MXU, f32 accumulation)
    h1 = jnp.dot(xb, w1_ref[...], preferred_element_type=jnp.float32)
    h1 = jnp.maximum(h1 + b1_ref[...], 0.0)
    # fc2 + ReLU (output lanes zero-padded 64 -> 128; exact)
    h2 = jnp.dot(h1.astype(jnp.bfloat16), w2_ref[...], preferred_element_type=jnp.float32)
    h2 = jnp.maximum(h2 + b2_ref[...], 0.0)
    # fc3: padded class lanes (>= 10) get exactly b3_pad = -1e30 (padded w3 rows/cols are
    # zero), so no iota/where mask is needed before the softmax reduction.
    logits = jnp.dot(h2.astype(jnp.bfloat16), w3_ref[...], preferred_element_type=jnp.float32)
    logits = logits + b3_ref[...]
    # log_softmax over the class lanes (numerically stable); padded lanes contribute exp(.)=0.
    m = jnp.max(logits, axis=-1, keepdims=True)
    shifted = logits - m
    lse = jnp.log(jnp.sum(jnp.exp(shifted), axis=-1, keepdims=True))
    o_ref[...] = shifted - lse


def _choose_tb(B):
    if B <= 512:
        return B  # single block covering the full array (always a legal block shape)
    b16 = _round_up(B, 16)  # 16-sublane granularity keeps bf16 packing clean
    # >= 2 tiles so ("parallel",) can split batch tiles across v7x's 2 TensorCores,
    # each tile capped at TB_CAP rows.
    n_tiles = max(2, _cdiv(b16, TB_CAP))
    return _round_up(_cdiv(b16, n_tiles), 16)


def client_model_forward(x_nchw, params, tb=None):
    """x_nchw: (B, 1, 28, 28) float32. Returns (B, 10) float32 log-probabilities."""
    w1, b1, w2, b2, w3, b3 = params  # f32: (784,128),(1,128),(128,64),(1,64),(64,10),(1,10)
    B = x_nchw.shape[0]

    # x.view(-1, 784): reshape only — no wrapper-side cast or pad of the dominant stream.
    x = x_nchw.reshape(B, K_IN)

    # One-time, tiny weight/bias layout prep (bf16 weights for the MXU; f32 biases).
    w1b = w1.astype(jnp.bfloat16)                                            # (784, 128)
    w2p = jnp.pad(w2, ((0, 0), (0, H2_PAD - H2_RAW))).astype(jnp.bfloat16)   # (128, 128)
    b2p = jnp.pad(b2, ((0, 0), (0, H2_PAD - H2_RAW)))                        # (1, 128) f32
    w3p = jnp.pad(w3, ((0, H2_PAD - H2_RAW), (0, NC_PAD - NUM_CLASSES))
                  ).astype(jnp.bfloat16)                                     # (128, 16)
    b3p = jnp.pad(b3, ((0, 0), (0, NC_PAD - NUM_CLASSES)),
                  constant_values=-1e30)                                     # (1, 16) f32

    if tb is None:
        tb = _choose_tb(B)
    grid = (_cdiv(B, tb),)  # no batch padding; Pallas masks the boundary block

    def _resident(shape):
        return pl.BlockSpec(shape, lambda i: (0,) * len(shape))

    out = pl.pallas_call(
        mlp_kernel,
        out_shape=jax.ShapeDtypeStruct((B, NC_PAD), jnp.float32),
        grid=grid,
        in_specs=[
            pl.BlockSpec((tb, K_IN), lambda i: (i, 0)),   # x: streamed, double-buffered
            _resident(w1b.shape), _resident(b1.shape),    # weights/biases: VMEM-resident
            _resident(w2p.shape), _resident(b2p.shape),
            _resident(w3p.shape), _resident(b3p.shape),
        ],
        out_specs=pl.BlockSpec((tb, NC_PAD), lambda i: (i, 0)),
        compiler_params=pltpu.CompilerParams(
            dimension_semantics=("parallel",),   # megacore sharding on v7x; harmless elsewhere
            vmem_limit_bytes=48 << 20,           # peak usage ~30 MB at TB_CAP; fits every gen
        ),
    )(x, w1b, b1, w2p, b2p, w3p, b3p)

    return out[:, :NUM_CLASSES]


def init_params(key):
    """Deterministic init matching nn.Linear shapes (weights stored transposed: (in, out))."""
    k1, k2, k3, k4, k5, k6 = jax.random.split(key, 6)

    def lin(kw, kb, fan_in, fan_out):
        bound = 1.0 / jnp.sqrt(fan_in)
        w = jax.random.uniform(kw, (fan_in, fan_out), jnp.float32, -bound, bound)
        b = jax.random.uniform(kb, (1, fan_out), jnp.float32, -bound, bound)
        return w, b

    w1, b1 = lin(k1, k2, K_IN, H1)
    w2, b2 = lin(k3, k4, H1, H2_RAW)
    w3, b3 = lin(k5, k6, H2_RAW, NUM_CLASSES)
    return (w1, b1, w2, b2, w3, b3)


def _reference_forward(x_nchw, params):
    """Plain-JAX reference mirroring the kernel's bf16-operand / f32-accumulate math."""
    w1, b1, w2, b2, w3, b3 = params
    x = x_nchw.reshape(x_nchw.shape[0], K_IN).astype(jnp.bfloat16)
    w1b, w2b, w3b = (w.astype(jnp.bfloat16) for w in (w1, w2, w3))
    h1 = jnp.maximum(jnp.dot(x, w1b, preferred_element_type=jnp.float32) + b1, 0.0)
    h2 = jnp.maximum(
        jnp.dot(h1.astype(jnp.bfloat16), w2b, preferred_element_type=jnp.float32) + b2, 0.0)
    logits = jnp.dot(h2.astype(jnp.bfloat16), w3b, preferred_element_type=jnp.float32) + b3
    return jax.nn.log_softmax(logits, axis=1)


if __name__ == "__main__":
    key = jax.random.PRNGKey(0)
    kx, kp = jax.random.split(key)

    B = 32
    x = jax.random.normal(kx, (B, 1, 28, 28), jnp.float32)  # MNIST-like NCHW input
    params = init_params(kp)

    # tb=16 -> grid=(2,): exercises the streamed/pipelined batch grid even at this small size
    # (16 sublanes also satisfies the bf16 min-tile used for the in-kernel cast).
    out = client_model_forward(x, params, tb=16)
    out = jax.block_until_ready(out)

    ref = _reference_forward(x, params)
    assert out.shape == (B, NUM_CLASSES)
    assert jnp.allclose(out, ref, atol=2e-2, rtol=2e-2), "mismatch vs reference"
    # log_softmax rows should exp-sum to 1
    assert jnp.allclose(jnp.sum(jnp.exp(out), axis=1), 1.0, atol=1e-3)

    print("KERNEL_OK")
</pallas_src>

<mosaic_0001>
module attributes {stable_mosaic.version = 11 : i64} {
  func.func @mlp_kernel(%arg0: i32, %arg1: memref<16x784xf32, #tpu.memory_space<vmem>>, %arg2: memref<784x128xbf16, #tpu.memory_space<vmem>>, %arg3: memref<1x128xf32, #tpu.memory_space<vmem>>, %arg4: memref<128x128xbf16, #tpu.memory_space<vmem>>, %arg5: memref<1x128xf32, #tpu.memory_space<vmem>>, %arg6: memref<128x16xbf16, #tpu.memory_space<vmem>>, %arg7: memref<1x16xf32, #tpu.memory_space<vmem>>, %arg8: memref<16x16xf32, #tpu.memory_space<vmem>>) attributes {dimension_semantics = [#tpu.dimension_semantics<parallel>], iteration_bounds = array<i64: 2>, scalar_prefetch = 0 : i64, scratch_operands = 0 : i64, tpu.core_type = #tpu.core_type<tc>, window_params = [{transform_indices = @transform_0, window_bounds = array<i64: 16, 784>}, {pipeline_mode = #tpu.pipeline_mode<synchronous>, transform_indices = @transform_1, window_bounds = array<i64: 784, 128>}, {pipeline_mode = #tpu.pipeline_mode<synchronous>, transform_indices = @transform_2, window_bounds = array<i64: 1, 128>}, {pipeline_mode = #tpu.pipeline_mode<synchronous>, transform_indices = @transform_3, window_bounds = array<i64: 128, 128>}, {pipeline_mode = #tpu.pipeline_mode<synchronous>, transform_indices = @transform_4, window_bounds = array<i64: 1, 128>}, {pipeline_mode = #tpu.pipeline_mode<synchronous>, transform_indices = @transform_5, window_bounds = array<i64: 128, 16>}, {pipeline_mode = #tpu.pipeline_mode<synchronous>, transform_indices = @transform_6, window_bounds = array<i64: 1, 16>}, {transform_indices = @transform_7, window_bounds = array<i64: 16, 16>}]} {
    %c0 = arith.constant 0 : index
    %c0_0 = arith.constant 0 : index
    %0 = vector.load %arg1[%c0, %c0_0] : memref<16x784xf32, #tpu.memory_space<vmem>>, vector<16x784xf32>
    %1 = arith.truncf %0 : vector<16x784xf32> to vector<16x784xbf16>
    %c0_1 = arith.constant 0 : index
    %c0_2 = arith.constant 0 : index
    %2 = vector.load %arg2[%c0_1, %c0_2] : memref<784x128xbf16, #tpu.memory_space<vmem>>, vector<784x128xbf16>
    %cst = arith.constant dense<0.000000e+00> : vector<16x128xf32>
    %3 = tpu.matmul %1, %2, %cst {dimension_numbers = #tpu.dot_dimension_numbers<[1], [0], [0], [1], [0, 0, 1, 1], [], []>} : vector<16x784xbf16>, vector<784x128xbf16>, vector<16x128xf32> -> vector<16x128xf32>
    %c0_3 = arith.constant 0 : index
    %c0_4 = arith.constant 0 : index
    %4 = vector.load %arg3[%c0_3, %c0_4] : memref<1x128xf32, #tpu.memory_space<vmem>>, vector<1x128xf32>
    %5 = vector.broadcast %4 : vector<1x128xf32> to vector<16x128xf32>
    %6 = arith.addf %3, %5 : vector<16x128xf32>
    %cst_5 = arith.constant 0.000000e+00 : f32
    %7 = vector.broadcast %cst_5 : f32 to vector<16x128xf32>
    %8 = arith.maximumf %6, %7 : vector<16x128xf32>
    %9 = arith.truncf %8 : vector<16x128xf32> to vector<16x128xbf16>
    %c0_6 = arith.constant 0 : index
    %c0_7 = arith.constant 0 : index
    %10 = vector.load %arg4[%c0_6, %c0_7] : memref<128x128xbf16, #tpu.memory_space<vmem>>, vector<128x128xbf16>
    %cst_8 = arith.constant dense<0.000000e+00> : vector<16x128xf32>
    %11 = tpu.matmul %9, %10, %cst_8 {dimension_numbers = #tpu.dot_dimension_numbers<[1], [0], [0], [1], [0, 0, 1, 1], [], []>} : vector<16x128xbf16>, vector<128x128xbf16>, vector<16x128xf32> -> vector<16x128xf32>
    %c0_9 = arith.constant 0 : index
    %c0_10 = arith.constant 0 : index
    %12 = vector.load %arg5[%c0_9, %c0_10] : memref<1x128xf32, #tpu.memory_space<vmem>>, vector<1x128xf32>
    %13 = vector.broadcast %12 : vector<1x128xf32> to vector<16x128xf32>
    %14 = arith.addf %11, %13 : vector<16x128xf32>
    %cst_11 = arith.constant 0.000000e+00 : f32
    %15 = vector.broadcast %cst_11 : f32 to vector<16x128xf32>
    %16 = arith.maximumf %14, %15 : vector<16x128xf32>
    %17 = arith.truncf %16 : vector<16x128xf32> to vector<16x128xbf16>
    %c0_12 = arith.constant 0 : index
    %c0_13 = arith.constant 0 : index
    %18 = vector.load %arg6[%c0_12, %c0_13] : memref<128x16xbf16, #tpu.memory_space<vmem>>, vector<128x16xbf16>
    %cst_14 = arith.constant dense<0.000000e+00> : vector<16x16xf32>
    %19 = tpu.matmul %17, %18, %cst_14 {dimension_numbers = #tpu.dot_dimension_numbers<[1], [0], [0], [1], [0, 0, 1, 1], [], []>} : vector<16x128xbf16>, vector<128x16xbf16>, vector<16x16xf32> -> vector<16x16xf32>
    %c0_15 = arith.constant 0 : index
    %c0_16 = arith.constant 0 : index
    %20 = vector.load %arg7[%c0_15, %c0_16] : memref<1x16xf32, #tpu.memory_space<vmem>>, vector<1x16xf32>
    %21 = vector.broadcast %20 : vector<1x16xf32> to vector<16x16xf32>
    %22 = arith.addf %19, %21 : vector<16x16xf32>
    %cst_17 = arith.constant dense<0xFF800000> : vector<16xf32>
    %23 = vector.multi_reduction <maximumf>, %22, %cst_17 [1] : vector<16x16xf32> to vector<16xf32>
    %24 = vector.shape_cast %23 : vector<16xf32> to vector<16x1xf32>
    %25 = vector.broadcast %24 : vector<16x1xf32> to vector<16x16xf32>
    %26 = arith.subf %22, %25 : vector<16x16xf32>
    %27 = math.exp %26 : vector<16x16xf32>
    %cst_18 = arith.constant dense<0.000000e+00> : vector<16xf32>
    %28 = vector.multi_reduction <add>, %27, %cst_18 [1] : vector<16x16xf32> to vector<16xf32>
    %29 = vector.shape_cast %28 : vector<16xf32> to vector<16x1xf32>
    %30 = math.log %29 : vector<16x1xf32>
    %31 = vector.broadcast %30 : vector<16x1xf32> to vector<16x16xf32>
    %32 = arith.subf %26, %31 : vector<16x16xf32>
    %c0_19 = arith.constant 0 : index
    %c0_20 = arith.constant 0 : index
    %33 = vector.load %arg8[%c0_19, %c0_20] : memref<16x16xf32, #tpu.memory_space<vmem>>, vector<16x16xf32>
    tpu.vector_store %arg8[%c0_19, %c0_20], %32 {strides = array<i32>} : memref<16x16xf32, #tpu.memory_space<vmem>>, vector<16x16xf32>,
    return
  }
  func.func @transform_0(%arg0: i32) -> (i32, i32) {
    %c0_i32 = arith.constant 0 : i32
    %c0_i32_0 = arith.constant 0 : i32
    return %arg0, %c0_i32 : i32, i32
  }
  func.func @transform_1(%arg0: i32) -> (i32, i32) {
    %c0_i32 = arith.constant 0 : i32
    %c0_i32_0 = arith.constant 0 : i32
    %c0_i32_1 = arith.constant 0 : i32
    return %c0_i32, %c0_i32_0 : i32, i32
  }
  func.func @transform_2(%arg0: i32) -> (i32, i32) {
    %c0_i32 = arith.constant 0 : i32
    %c0_i32_0 = arith.constant 0 : i32
    %c0_i32_1 = arith.constant 0 : i32
    return %c0_i32, %c0_i32_0 : i32, i32
  }
  func.func @transform_3(%arg0: i32) -> (i32, i32) {
    %c0_i32 = arith.constant 0 : i32
    %c0_i32_0 = arith.constant 0 : i32
    %c0_i32_1 = arith.constant 0 : i32
    return %c0_i32, %c0_i32_0 : i32, i32
  }
  func.func @transform_4(%arg0: i32) -> (i32, i32) {
    %c0_i32 = arith.constant 0 : i32
    %c0_i32_0 = arith.constant 0 : i32
    %c0_i32_1 = arith.constant 0 : i32
    return %c0_i32, %c0_i32_0 : i32, i32
  }
  func.func @transform_5(%arg0: i32) -> (i32, i32) {
    %c0_i32 = arith.constant 0 : i32
    %c0_i32_0 = arith.constant 0 : i32
    %c0_i32_1 = arith.constant 0 : i32
    return %c0_i32, %c0_i32_0 : i32, i32
  }
  func.func @transform_6(%arg0: i32) -> (i32, i32) {
    %c0_i32 = arith.constant 0 : i32
    %c0_i32_0 = arith.constant 0 : i32
    %c0_i32_1 = arith.constant 0 : i32
    return %c0_i32, %c0_i32_0 : i32, i32
  }
  func.func @transform_7(%arg0: i32) -> (i32, i32) {
    %c0_i32 = arith.constant 0 : i32
    %c0_i32_0 = arith.constant 0 : i32
    return %arg0, %c0_i32 : i32, i32
  }
}

</mosaic_0001>

<llo_original>
// kernel: tpu_custom_call.1
$region0: #{tpu_custom_call.1}
  #allocation0 [shape = 'u32[]', space=smem, size = 0x4, offset = 0x4, fixed_abs, tag = 'smem constant byte address 0x4 - core index']
  #allocation1 [shape = 'u32[144,128]{1,0:T(1,128)}', space=vmem, size = 0x12000, scoped, tag = 'internal scratch']
  %s0 = inlined_call_operand.hbm [shape: f32[32,784], index: 0, kind: input, shape index: {}]
  %s1 = inlined_call_operand.hbm [shape: bf16[784,128], index: 1, kind: input, shape index: {}]
  %s2 = inlined_call_operand.vmem [shape: f32[1,128], index: 2, kind: input, shape index: {}]
  %s3 = inlined_call_operand.vmem [shape: bf16[128,128], index: 3, kind: input, shape index: {}]
  %s4 = inlined_call_operand.vmem [shape: f32[1,128], index: 4, kind: input, shape index: {}]
  %s5 = inlined_call_operand.vmem [shape: bf16[128,16], index: 5, kind: input, shape index: {}]
  %s6 = inlined_call_operand.vmem [shape: f32[1,16], index: 6, kind: input, shape index: {}]
  %s7 = inlined_call_operand.vmem [shape: f32[32,16], index: 7, kind: output, shape index: {}]
  %s8 = sld [smem:[#allocation0]]
  $region69: #{tpu_custom_call.1} parent=0
    _
  %s10 = ssub.s32 1, %s8
  %s11 = scalar_select 0, %s10, %s8
  $region1: #{tpu_custom_call.1} parent=0
    #allocation2 [shape = 'u8[114688]{0}', space=vmem, size = 0x1c000, scoped, tag = 'input window, operand 0']
    #allocation3 [shape = 's32[2]{0}', space=sflag, size = 0x8, scoped, tag = 'scoped memory for tpu_custom_call.1']
    #allocation4 [shape = 'u8[200704]{0}', space=vmem, size = 0x31000, scoped, tag = 'input window, operand 1, single buffered']
    #allocation5 [shape = 's32[1]{0}', space=sflag, size = 0x4, scoped, tag = 'scoped memory for tpu_custom_call.1']
    %12 = vsyncpa [#allocation3], 0
    %s13 = scalar_lea.sflag [#allocation3], 1
    %14 = vsyncpa %s13, 0
    %15 = vsyncpa [#allocation5], 0
    loop: start=0, step=1, limit=4
    $region2: #{tpu_custom_call.1} parent=1 // loop_pre_header
      _
    $region3: #{tpu_custom_call.1} parent=1 // loop_header
      %s17 = sphi 0, %s21
      %p18 = scmp.ge.s32.totalorder %s17, 4
      %s27 = sphi 0, %s29
      %s30 = sphi 0, %s27
      %s31 = sphi 0, %s30
      %s47 = sphi 0, %s31
      %s51 = sphi 0, %s51
      %s53 = sphi 0, %s51
      %s54 = sphi 0, %s53
      %s68 = sphi 0, %s54
      %s72 = sphi 0, %s72
      %s74 = sphi 0, %s72
      %s75 = sphi 0, %s74
      %s89 = sphi 0, %s75
      %s93 = sphi 0, %s93
      %s95 = sphi 0, %s93
      %s96 = sphi 0, %s95
      %s110 = sphi 0, %s96
      %s114 = sphi 0, %s114
      %s116 = sphi 0, %s114
      %s117 = sphi 0, %s116
      %s131 = sphi 0, %s117
      %s135 = sphi 0, %s135
      %s137 = sphi 0, %s135
      %s138 = sphi 0, %s137
      %s152 = sphi 0, %s138
      %s156 = sphi 0, %s156
      %s158 = sphi 0, %s156
      %s159 = sphi 0, %s158
      %s173 = sphi 0, %s159
      %s179 = sphi 0, %s181
      %s182 = sphi 0, %s179
      %s183 = sphi 0, %s182
      %s199 = sphi 0, %s183
    $region4: #{tpu_custom_call.1} parent=1 // loop_header_branch
      %20 = sbr.rel (%p18) target = $region8
    $region5: #{tpu_custom_call.1} parent=1 // loop_body
      %s22 = ssub.s32 %s17, 1
      %s23 = ssub.s32 %s17, 2
      %s24 = sadd.s32 %s17, 1
      %s25 = ssub.s32 %s17, %s24
      %p26 = scmp.eq.s32.totalorder %s25, 0
      %s28 = sadd.s32 %s27, 1
      %s29 = scalar_select %p26, %s27, %s28
      %p32 = pneg %p26
      %p33 = scmp.eq.s32.totalorder %s17, 1
      %p34 = por %p32, %p33
      %p35 = scmp.ne.s32.totalorder %s27, %s30
      %p36 = scmp.eq.s32.totalorder %s17, 0
      %p37 = por %p35, %p36
      %p38 = scmp.ne.s32.totalorder %s27, %s30
      %p39 = scmp.eq.s32.totalorder %s22, 1
      %p40 = por %p38, %p39
      %p41 = scmp.ne.s32.totalorder %s30, %s31
      %p42 = scmp.eq.s32.totalorder %s22, 0
      %p43 = por %p41, %p42
      %p44 = scmp.ne.s32.totalorder %s30, %s31
      %p45 = scmp.eq.s32.totalorder %s23, 1
      %p46 = por %p44, %p45
      %p48 = scmp.ne.s32.totalorder %s31, %s47
      %p49 = scmp.eq.s32.totalorder %s23, 0
      %p50 = por %p48, %p49
      %s52 = sadd.s32 %s51, 1
      %p55 = scmp.eq.s32.totalorder %s17, 1
      %p56 = scmp.ne.s32.totalorder %s51, %s53
      %p57 = scmp.eq.s32.totalorder %s17, 0
      %p58 = por %p56, %p57
      %p59 = scmp.ne.s32.totalorder %s51, %s53
      %p60 = scmp.eq.s32.totalorder %s22, 1
      %p61 = por %p59, %p60
      %p62 = scmp.ne.s32.totalorder %s53, %s54
      %p63 = scmp.eq.s32.totalorder %s22, 0
      %p64 = por %p62, %p63
      %p65 = scmp.ne.s32.totalorder %s53, %s54
      %p66 = scmp.eq.s32.totalorder %s23, 1
      %p67 = por %p65, %p66
      %p69 = scmp.ne.s32.totalorder %s54, %s68
      %p70 = scmp.eq.s32.totalorder %s23, 0
      %p71 = por %p69, %p70
      %s73 = sadd.s32 %s72, 1
      %p76 = scmp.eq.s32.totalorder %s17, 1
      %p77 = scmp.ne.s32.totalorder %s72, %s74
      %p78 = scmp.eq.s32.totalorder %s17, 0
      %p79 = por %p77, %p78
      %p80 = scmp.ne.s32.totalorder %s72, %s74
      %p81 = scmp.eq.s32.totalorder %s22, 1
      %p82 = por %p80, %p81
      %p83 = scmp.ne.s32.totalorder %s74, %s75
      %p84 = scmp.eq.s32.totalorder %s22, 0
      %p85 = por %p83, %p84
      %p86 = scmp.ne.s32.totalorder %s74, %s75
      %p87 = scmp.eq.s32.totalorder %s23, 1
      %p88 = por %p86, %p87
      %p90 = scmp.ne.s32.totalorder %s75, %s89
      %p91 = scmp.eq.s32.totalorder %s23, 0
      %p92 = por %p90, %p91
      %s94 = sadd.s32 %s93, 1
      %p97 = scmp.eq.s32.totalorder %s17, 1
      %p98 = scmp.ne.s32.totalorder %s93, %s95
      %p99 = scmp.eq.s32.totalorder %s17, 0
      %p100 = por %p98, %p99
      %p101 = scmp.ne.s32.totalorder %s93, %s95
      %p102 = scmp.eq.s32.totalorder %s22, 1
      %p103 = por %p101, %p102
      %p104 = scmp.ne.s32.totalorder %s95, %s96
      %p105 = scmp.eq.s32.totalorder %s22, 0
      %p106 = por %p104, %p105
      %p107 = scmp.ne.s32.totalorder %s95, %s96
      %p108 = scmp.eq.s32.totalorder %s23, 1
      %p109 = por %p107, %p108
      %p111 = scmp.ne.s32.totalorder %s96, %s110
      %p112 = scmp.eq.s32.totalorder %s23, 0
      %p113 = por %p111, %p112
      %s115 = sadd.s32 %s114, 1
      %p118 = scmp.eq.s32.totalorder %s17, 1
      %p119 = scmp.ne.s32.totalorder %s114, %s116
      %p120 = scmp.eq.s32.totalorder %s17, 0
      %p121 = por %p119, %p120
      %p122 = scmp.ne.s32.totalorder %s114, %s116
      %p123 = scmp.eq.s32.totalorder %s22, 1
      %p124 = por %p122, %p123
      %p125 = scmp.ne.s32.totalorder %s116, %s117
      %p126 = scmp.eq.s32.totalorder %s22, 0
      %p127 = por %p125, %p126
      %p128 = scmp.ne.s32.totalorder %s116, %s117
      %p129 = scmp.eq.s32.totalorder %s23, 1
      %p130 = por %p128, %p129
      %p132 = scmp.ne.s32.totalorder %s117, %s131
      %p133 = scmp.eq.s32.totalorder %s23, 0
      %p134 = por %p132, %p133
      %s136 = sadd.s32 %s135, 1
      %p139 = scmp.eq.s32.totalorder %s17, 1
      %p140 = scmp.ne.s32.totalorder %s135, %s137
      %p141 = scmp.eq.s32.totalorder %s17, 0
      %p142 = por %p140, %p141
      %p143 = scmp.ne.s32.totalorder %s135, %s137
      %p144 = scmp.eq.s32.totalorder %s22, 1
      %p145 = por %p143, %p144
      %p146 = scmp.ne.s32.totalorder %s137, %s138
      %p147 = scmp.eq.s32.totalorder %s22, 0
      %p148 = por %p146, %p147
      %p149 = scmp.ne.s32.totalorder %s137, %s138
      %p150 = scmp.eq.s32.totalorder %s23, 1
      %p151 = por %p149, %p150
      %p153 = scmp.ne.s32.totalorder %s138, %s152
      %p154 = scmp.eq.s32.totalorder %s23, 0
      %p155 = por %p153, %p154
      %s157 = sadd.s32 %s156, 1
      %p160 = scmp.eq.s32.totalorder %s17, 1
      %p161 = scmp.ne.s32.totalorder %s156, %s158
      %p162 = scmp.eq.s32.totalorder %s17, 0
      %p163 = por %p161, %p162
      %p164 = scmp.ne.s32.totalorder %s156, %s158
      %p165 = scmp.eq.s32.totalorder %s22, 1
      %p166 = por %p164, %p165
      %p167 = scmp.ne.s32.totalorder %s158, %s159
      %p168 = scmp.eq.s32.totalorder %s22, 0
      %p169 = por %p167, %p168
      %p170 = scmp.ne.s32.totalorder %s158, %s159
      %p171 = scmp.eq.s32.totalorder %s23, 1
      %p172 = por %p170, %p171
      %p174 = scmp.ne.s32.totalorder %s159, %s173
      %p175 = scmp.eq.s32.totalorder %s23, 0
      %p176 = por %p174, %p175
      %s177 = ssub.s32 %s17, %s24
      %p178 = scmp.eq.s32.totalorder %s177, 0
      %s180 = sadd.s32 %s179, 1
      %s181 = scalar_select %p178, %s179, %s180
      %p184 = pneg %p178
      %p185 = scmp.eq.s32.totalorder %s17, 1
      %p186 = por %p184, %p185
      %p187 = scmp.ne.s32.totalorder %s179, %s182
      %p188 = scmp.eq.s32.totalorder %s17, 0
      %p189 = por %p187, %p188
      %p190 = scmp.ne.s32.totalorder %s179, %s182
      %p191 = scmp.eq.s32.totalorder %s22, 1
      %p192 = por %p190, %p191
      %p193 = scmp.ne.s32.totalorder %s182, %s183
      %p194 = scmp.eq.s32.totalorder %s22, 0
      %p195 = por %p193, %p194
      %p196 = scmp.ne.s32.totalorder %s182, %s183
      %p197 = scmp.eq.s32.totalorder %s23, 1
      %p198 = por %p196, %p197
      %p200 = scmp.ne.s32.totalorder %s183, %s199
      %p201 = scmp.eq.s32.totalorder %s23, 0
      %p202 = por %p200, %p201
      %p203 = scmp.le.s32.totalorder 1, %s17
      %p204 = scmp.lt.s32.totalorder %s17, 3
      %p205 = pnand %p203, %p204
      %p206 = pneg %p205
      // Predicated region
      $region9: #{tpu_custom_call.1} parent=5 // pred_check
        _
      $region10: #{tpu_custom_call.1} parent=5 // pred_check_branch
        %208 = sbr.rel (%p205) target = $region12
      $region11: #{tpu_custom_call.1} parent=5 // pred_region
        %s209 = ssub.s32 %s17, 1
        // Predicated region
        $region13: #{tpu_custom_call.1} parent=11 // pred_check
          %p210 = pneg %p64
        $region14: #{tpu_custom_call.1} parent=11 // pred_check_branch
          %212 = sbr.rel (%p210) target = $region16
        $region15: #{tpu_custom_call.1} parent=11 // pred_region
          %s214 = ssub.s32 6272, 6272
          %215 = vsyncadd [#allocation5], %s214
          %s216 = sshll.u32 [#allocation4], 4
          %s217 = int_to_ptr.vmem [resolvable:$true] %s216
          %222 = dma.hbm_to_vmem [thread:$0]  %s1, 6272, %s217, [#allocation5], 64, 64, 4
        $region16: #{tpu_custom_call.1} parent=11 // pred_fallthru
          _
        // Predicated region
        $region17: #{tpu_custom_call.1} parent=11 // pred_check
          %p223 = pneg %p85
        $region18: #{tpu_custom_call.1} parent=11 // pred_check_branch
          %225 = sbr.rel (%p223) target = $region20
        $region19: #{tpu_custom_call.1} parent=11 // pred_region
          _
        $region20: #{tpu_custom_call.1} parent=11 // pred_fallthru
          _
        // Predicated region
        $region21: #{tpu_custom_call.1} parent=11 // pred_check
          %p226 = pneg %p106
        $region22: #{tpu_custom_call.1} parent=11 // pred_check_branch
          %228 = sbr.rel (%p226) target = $region24
        $region23: #{tpu_custom_call.1} parent=11 // pred_region
          _
        $region24: #{tpu_custom_call.1} parent=11 // pred_fallthru
          _
        // Predicated region
        $region25: #{tpu_custom_call.1} parent=11 // pred_check
          %p229 = pneg %p127
        $region26: #{tpu_custom_call.1} parent=11 // pred_check_branch
          %231 = sbr.rel (%p229) target = $region28
        $region27: #{tpu_custom_call.1} parent=11 // pred_region
          _
        $region28: #{tpu_custom_call.1} parent=11 // pred_fallthru
          _
        // Predicated region
        $region29: #{tpu_custom_call.1} parent=11 // pred_check
          %p232 = pneg %p148
        $region30: #{tpu_custom_call.1} parent=11 // pred_check_branch
          %234 = sbr.rel (%p232) target = $region32
        $region31: #{tpu_custom_call.1} parent=11 // pred_region
          _
        $region32: #{tpu_custom_call.1} parent=11 // pred_fallthru
          _
        // Predicated region
        $region33: #{tpu_custom_call.1} parent=11 // pred_check
          %p235 = pneg %p169
        $region34: #{tpu_custom_call.1} parent=11 // pred_check_branch
          %237 = sbr.rel (%p235) target = $region36
        $region35: #{tpu_custom_call.1} parent=11 // pred_region
          _
        $region36: #{tpu_custom_call.1} parent=11 // pred_fallthru
          _
      $region12: #{tpu_custom_call.1} parent=5 // pred_fallthru
        _
      %p238 = scmp.lt.s32.totalorder %s17, 2
      // Predicated region
      $region37: #{tpu_custom_call.1} parent=5 // pred_check
        %p239 = pneg %p238
      $region38: #{tpu_custom_call.1} parent=5 // pred_check_branch
        %241 = sbr.rel (%p239) target = $region40
      $region39: #{tpu_custom_call.1} parent=5 // pred_region
        // Predicated region
        $region41: #{tpu_custom_call.1} parent=39 // pred_check
          %p242 = pneg %p37
        $region42: #{tpu_custom_call.1} parent=39 // pred_check_branch
          %244 = sbr.rel (%p242) target = $region44
        $region43: #{tpu_custom_call.1} parent=39 // pred_region
          %s245 = sand.u32 %s27, 1
          %s246 = scalar_lea.sflag [#allocation3], %s245
          %s247 = sand.u32 %s27, 1
          %s248 = smul.addr %s247, 112
          %s249 = scalar_lea.vmem [#allocation2], %s248
          %s250 = smul.u32 2, %s17
          %s252 = ssub.s32 1792, 1792
          %253 = vsyncadd %s246, %s252
          %s254 = smul.addr %s250, 7
          %s255 = smul.addr %s254, 128
          %s256 = scalar_lea.hbm %s0, %s255
          %s257 = sshll.u32 %s249, 4
          %s258 = int_to_ptr.vmem [resolvable:$true] %s257
          %263 = dma.hbm_to_vmem [thread:$0]  %s256, 1792, %s258, %s246, 896, 896, 56
        $region44: #{tpu_custom_call.1} parent=39 // pred_fallthru
          _
      $region40: #{tpu_custom_call.1} parent=5 // pred_fallthru
        _
      %p264 = scmp.le.s32.totalorder 1, %s17
      %p265 = scmp.lt.s32.totalorder %s17, 3
      %p266 = pnand %p264, %p265
      %p267 = pneg %p266
      // Predicated region
      $region45: #{tpu_custom_call.1} parent=5 // pred_check
        _
      $region46: #{tpu_custom_call.1} parent=5 // pred_check_branch
        %269 = sbr.rel (%p266) target = $region48
      $region47: #{tpu_custom_call.1} parent=5 // pred_region
        %s270 = ssub.s32 %s17, 1
        %s271 = sand.u32 %s30, 1
        %s272 = scalar_lea.sflag [#allocation3], %s271
        %s273 = sand.u32 %s30, 1
        %s274 = smul.addr %s273, 112
        %s275 = scalar_lea.vmem [#allocation2], %s274
        // Predicated region
        $region49: #{tpu_custom_call.1} parent=47 // pred_check
          %p276 = pneg %p43
        $region50: #{tpu_custom_call.1} parent=47 // pred_check_branch
          %278 = sbr.rel (%p276) target = $region52
        $region51: #{tpu_custom_call.1} parent=47 // pred_region
          %279 = dma.done %s272, 1792
        $region52: #{tpu_custom_call.1} parent=47 // pred_fallthru
          _
        // Predicated region
        $region53: #{tpu_custom_call.1} parent=47 // pred_check
          %p280 = pneg %p64
        $region54: #{tpu_custom_call.1} parent=47 // pred_check_branch
          %282 = sbr.rel (%p280) target = $region56
        $region55: #{tpu_custom_call.1} parent=47 // pred_region
          %283 = dma.done [#allocation5], 6272
        $region56: #{tpu_custom_call.1} parent=47 // pred_fallthru
          _
        %s284 = sand.u32 %s30, 1
        %s285 = scalar_lea.sflag [#allocation3], %s284
        %s286 = sand.u32 %s30, 1
        %s287 = smul.addr %s286, 112
        %s288 = scalar_lea.vmem [#allocation2], %s287
        %p289 = pneg %p43
        %p290 = pneg %p40
        %p291 = pneg %p64
        %p292 = pneg %p61
        %p293 = pneg %p85
        %p294 = pneg %p82
        %p295 = pneg %p106
        %p296 = pneg %p103
        %p297 = pneg %p127
        %p298 = pneg %p124
        %p299 = pneg %p148
        %p300 = pneg %p145
        %p301 = pneg %p169
        %p302 = pneg %p166
        %p303 = pneg %p195
        %p304 = pneg %p192
        %s305 = smul.u32 2, %s22
        %p306 = scmp.lt.s32.totalorder %s305, 3
        %s307 = scalar_select %p306, %s305, 3
        %s308 = smul.addr %s307, 8
        %s309 = scalar_lea.vmem %s7, %s308
        %s310 = smul.u32 2, %s22
        %s311 = smul.u32 2, %s22
        %p312 = scmp.lt.s32.totalorder %s311, 3
        %s313 = scalar_select %p312, %s311, 3
        %s314 = smul.addr %s313, 8
        %s315 = scalar_lea.vmem %s7, %s314
        %s316 = smul.u32 2, %s22
        %v318 = vld [vmem:[%s275] sm:$0xff]
        %v319 = vld [vmem:[%s275 + $0x8] sm:$0xff]
        %v320 = vld [vmem:[%s275 + $0x10] sm:$0xff]
        %v321 = vld [vmem:[%s275 + $0x18] sm:$0xff]
        %v322 = vld [vmem:[%s275 + $0x20] sm:$0xff]
        %v323 = vld [vmem:[%s275 + $0x28] sm:$0xff]
        %v324 = vld [vmem:[%s275 + $0x30] sm:$0xff]
        %v325 = vld [vmem:[%s275 + $0x38] sm:$0xff]
        %v326 = vld [vmem:[%s275 + $0x40] sm:$0xff]
        %v327 = vld [vmem:[%s275 + $0x48] sm:$0xff]
        %v328 = vld [vmem:[%s275 + $0x50] sm:$0xff]
        %v329 = vld [vmem:[%s275 + $0x58] sm:$0xff]
        %v330 = vld [vmem:[%s275 + $0x60] sm:$0xff]
        %v331 = vld [vmem:[%s275 + $0x68] sm:$0xff]
        %v332 = vpack.c.bf16 %v325, %v318
        %v333 = vpack.c.bf16 %v326, %v319
        %v334 = vpack.c.bf16 %v327, %v320
        %v335 = vpack.c.bf16 %v328, %v321
        %v336 = vpack.c.bf16 %v329, %v322
        %v337 = vpack.c.bf16 %v330, %v323
        %v338 = vpack.c.bf16 %v331, %v324
        %v339 = vld [vmem:[#allocation4] sm:$0xf]
        %v340 = vld [vmem:[#allocation4 + $0x4] sm:$0xf]
        %v341 = vld [vmem:[#allocation4 + $0x8] sm:$0xf]
        %v342 = vld [vmem:[#allocation4 + $0xc] sm:$0xf]
        %v343 = vld [vmem:[#allocation4 + $0x10] sm:$0xf]
        %v344 = vld [vmem:[#allocation4 + $0x14] sm:$0xf]
        %v345 = vld [vmem:[#allocation4 + $0x18] sm:$0xf]
        %v346 = vld [vmem:[#allocation4 + $0x1c] sm:$0xf]
        %v347 = vld [vmem:[#allocation4 + $0x20] sm:$0xf]
        %v348 = vld [vmem:[#allocation4 + $0x24] sm:$0xf]
        %v349 = vld [vmem:[#allocation4 + $0x28] sm:$0xf]
        %v350 = vld [vmem:[#allocation4 + $0x2c] sm:$0xf]
        %v351 = vld [vmem:[#allocation4 + $0x30] sm:$0xf]
        %v352 = vld [vmem:[#allocation4 + $0x34] sm:$0xf]
        %v353 = vld [vmem:[#allocation4 + $0x38] sm:$0xf]
        %v354 = vld [vmem:[#allocation4 + $0x3c] sm:$0xf]
        %v355 = vld [vmem:[#allocation4 + $0x40] sm:$0xf]
        %v356 = vld [vmem:[#allocation4 + $0x44] sm:$0xf]
        %v357 = vld [vmem:[#allocation4 + $0x48] sm:$0xf]
        %v358 = vld [vmem:[#allocation4 + $0x4c] sm:$0xf]
        %v359 = vld [vmem:[#allocation4 + $0x50] sm:$0xf]
        %v360 = vld [vmem:[#allocation4 + $0x54] sm:$0xf]
        %v361 = vld [vmem:[#allocation4 + $0x58] sm:$0xf]
        %v362 = vld [vmem:[#allocation4 + $0x5c] sm:$0xf]
        %v363 = vld [vmem:[#allocation4 + $0x60] sm:$0xf]
        %v364 = vld [vmem:[#allocation4 + $0x64] sm:$0xf]
        %v365 = vld [vmem:[#allocation4 + $0x68] sm:$0xf]
        %v366 = vld [vmem:[#allocation4 + $0x6c] sm:$0xf]
        %v367 = vld [vmem:[#allocation4 + $0x70] sm:$0xf]
        %v368 = vld [vmem:[#allocation4 + $0x74] sm:$0xf]
        %v369 = vld [vmem:[#allocation4 + $0x78] sm:$0xf]
        %v370 = vld [vmem:[#allocation4 + $0x7c] sm:$0xf]
        %v371 = vld [vmem:[#allocation4 + $0x80] sm:$0xf]
        %v372 = vld [vmem:[#allocation4 + $0x84] sm:$0xf]
        %v373 = vld [vmem:[#allocation4 + $0x88] sm:$0xf]
        %v374 = vld [vmem:[#allocation4 + $0x8c] sm:$0xf]
        %v375 = vld [vmem:[#allocation4 + $0x90] sm:$0xf]
        %v376 = vld [vmem:[#allocation4 + $0x94] sm:$0xf]
        %v377 = vld [vmem:[#allocation4 + $0x98] sm:$0xf]
        %v378 = vld [vmem:[#allocation4 + $0x9c] sm:$0xf]
        %v379 = vld [vmem:[#allocation4 + $0xa0] sm:$0xf]
        %v380 = vld [vmem:[#allocation4 + $0xa4] sm:$0xf]
        %v381 = vld [vmem:[#allocation4 + $0xa8] sm:$0xf]
        %v382 = vld [vmem:[#allocation4 + $0xac] sm:$0xf]
        %v383 = vld [vmem:[#allocation4 + $0xb0] sm:$0xf]
        %v384 = vld [vmem:[#allocation4 + $0xb4] sm:$0xf]
        %v385 = vld [vmem:[#allocation4 + $0xb8] sm:$0xf]
        %v386 = vld [vmem:[#allocation4 + $0xbc] sm:$0xf]
        %v387 = vld [vmem:[#allocation4 + $0xc0] sm:$0xf]
        %v388 = vld [vmem:[#allocation4 + $0xc4] sm:$0xf]
        %v389 = vld [vmem:[#allocation4 + $0xc8] sm:$0xf]
        %v390 = vld [vmem:[#allocation4 + $0xcc] sm:$0xf]
        %v391 = vld [vmem:[#allocation4 + $0xd0] sm:$0xf]
        %v392 = vld [vmem:[#allocation4 + $0xd4] sm:$0xf]
        %v393 = vld [vmem:[#allocation4 + $0xd8] sm:$0xf]
        %v394 = vld [vmem:[#allocation4 + $0xdc] sm:$0xf]
        %v395 = vld [vmem:[#allocation4 + $0xe0] sm:$0xf]
        %v396 = vld [vmem:[#allocation4 + $0xe4] sm:$0xf]
        %v397 = vld [vmem:[#allocation4 + $0xe8] sm:$0xf]
        %v398 = vld [vmem:[#allocation4 + $0xec] sm:$0xf]
        %v399 = vld [vmem:[#allocation4 + $0xf0] sm:$0xf]
        %v400 = vld [vmem:[#allocation4 + $0xf4] sm:$0xf]
        %v401 = vld [vmem:[#allocation4 + $0xf8] sm:$0xf]
        %v402 = vld [vmem:[#allocation4 + $0xfc] sm:$0xf]
        %v403 = vld [vmem:[#allocation4 + $0x100] sm:$0xf]
        %v404 = vld [vmem:[#allocation4 + $0x104] sm:$0xf]
        %v405 = vld [vmem:[#allocation4 + $0x108] sm:$0xf]
        %v406 = vld [vmem:[#allocation4 + $0x10c] sm:$0xf]
        %v407 = vld [vmem:[#allocation4 + $0x110] sm:$0xf]
        %v408 = vld [vmem:[#allocation4 + $0x114] sm:$0xf]
        %v409 = vld [vmem:[#allocation4 + $0x118] sm:$0xf]
        %v410 = vld [vmem:[#allocation4 + $0x11c] sm:$0xf]
        %v411 = vld [vmem:[#allocation4 + $0x120] sm:$0xf]
        %v412 = vld [vmem:[#allocation4 + $0x124] sm:$0xf]
        %v413 = vld [vmem:[#allocation4 + $0x128] sm:$0xf]
        %v414 = vld [vmem:[#allocation4 + $0x12c] sm:$0xf]
        %v415 = vld [vmem:[#allocation4 + $0x130] sm:$0xf]
        %v416 = vld [vmem:[#allocation4 + $0x134] sm:$0xf]
        %v417 = vld [vmem:[#allocation4 + $0x138] sm:$0xf]
        %v418 = vld [vmem:[#allocation4 + $0x13c] sm:$0xf]
        %v419 = vld [vmem:[#allocation4 + $0x140] sm:$0xf]
        %v420 = vld [vmem:[#allocation4 + $0x144] sm:$0xf]
        %v421 = vld [vmem:[#allocation4 + $0x148] sm:$0xf]
        %v422 = vld [vmem:[#allocation4 + $0x14c] sm:$0xf]
        %v423 = vld [vmem:[#allocation4 + $0x150] sm:$0xf]
        %v424 = vld [vmem:[#allocation4 + $0x154] sm:$0xf]
        %v425 = vld [vmem:[#allocation4 + $0x158] sm:$0xf]
        %v426 = vld [vmem:[#allocation4 + $0x15c] sm:$0xf]
        %v427 = vld [vmem:[#allocation4 + $0x160] sm:$0xf]
        %v428 = vld [vmem:[#allocation4 + $0x164] sm:$0xf]
        %v429 = vld [vmem:[#allocation4 + $0x168] sm:$0xf]
        %v430 = vld [vmem:[#allocation4 + $0x16c] sm:$0xf]
        %v431 = vld [vmem:[#allocation4 + $0x170] sm:$0xf]
        %v432 = vld [vmem:[#allocation4 + $0x174] sm:$0xf]
        %v433 = vld [vmem:[#allocation4 + $0x178] sm:$0xf]
        %v434 = vld [vmem:[#allocation4 + $0x17c] sm:$0xf]
        %v435 = vld [vmem:[#allocation4 + $0x180] sm:$0xf]
        %v436 = vld [vmem:[#allocation4 + $0x184] sm:$0xf]
        %v437 = vld [vmem:[%s2] sm:$0x1]
        %v439 = vlaneseq
        %v440 = vshrl.u32 %v439, 7
        %v441 = vsub.s32 0, %v440
        %v442 = vrot.slane %v437, %v441
        %v542 = vunpack.c.l.b16 %v339
        %v543 = vunpack.c.l.b16 %v340
        %v544 = vunpack.c.l.b16 %v341
        %v545 = vunpack.c.l.b16 %v342
        %v546 = vunpack.c.l.b16 %v343
        %v547 = vunpack.c.l.b16 %v344
        %v548 = vunpack.c.l.b16 %v345
        %v549 = vunpack.c.l.b16 %v346
        %v550 = vunpack.c.l.b16 %v347
        %v551 = vunpack.c.l.b16 %v348
        %v552 = vunpack.c.l.b16 %v349
        %v553 = vunpack.c.l.b16 %v350
        %v554 = vunpack.c.l.b16 %v351
        %v555 = vunpack.c.l.b16 %v352
        %v556 = vunpack.c.l.b16 %v353
        %v557 = vunpack.c.l.b16 %v354
        %v558 = vunpack.c.l.b16 %v355
        %v559 = vunpack.c.l.b16 %v356
        %v560 = vunpack.c.l.b16 %v357
        %v561 = vunpack.c.l.b16 %v358
        %v562 = vunpack.c.l.b16 %v359
        %v563 = vunpack.c.l.b16 %v360
        %v564 = vunpack.c.l.b16 %v361
        %v565 = vunpack.c.l.b16 %v362
        %v566 = vunpack.c.l.b16 %v363
        %v567 = vunpack.c.l.b16 %v364
        %v568 = vunpack.c.l.b16 %v365
        %v569 = vunpack.c.l.b16 %v366
        %v570 = vunpack.c.l.b16 %v367
        %v571 = vunpack.c.l.b16 %v368
        %v572 = vunpack.c.l.b16 %v369
        %v573 = vunpack.c.l.b16 %v370
        %v574 = vunpack.c.l.b16 %v371
        %v575 = vunpack.c.l.b16 %v372
        %v576 = vunpack.c.l.b16 %v373
        %v577 = vunpack.c.l.b16 %v374
        %v578 = vunpack.c.l.b16 %v375
        %v579 = vunpack.c.l.b16 %v376
        %v580 = vunpack.c.l.b16 %v377
        %v581 = vunpack.c.l.b16 %v378
        %v582 = vunpack.c.l.b16 %v379
        %v583 = vunpack.c.l.b16 %v380
        %v584 = vunpack.c.l.b16 %v381
        %v585 = vunpack.c.l.b16 %v382
        %v586 = vunpack.c.l.b16 %v383
        %v587 = vunpack.c.l.b16 %v384
        %v588 = vunpack.c.l.b16 %v385
        %v589 = vunpack.c.l.b16 %v386
        %v590 = vunpack.c.l.b16 %v387
        %v591 = vunpack.c.l.b16 %v388
        %v592 = vunpack.c.l.b16 %v389
        %v593 = vunpack.c.l.b16 %v390
        %v594 = vunpack.c.l.b16 %v391
        %v595 = vunpack.c.l.b16 %v392
        %v596 = vunpack.c.l.b16 %v393
        %v597 = vunpack.c.l.b16 %v394
        %v598 = vunpack.c.l.b16 %v395
        %v599 = vunpack.c.l.b16 %v396
        %v600 = vunpack.c.l.b16 %v397
        %v601 = vunpack.c.l.b16 %v398
        %v602 = vunpack.c.l.b16 %v399
        %v603 = vunpack.c.l.b16 %v400
        %v604 = vunpack.c.l.b16 %v401
        %v605 = vunpack.c.l.b16 %v402
        %v606 = vunpack.c.l.b16 %v403
        %v607 = vunpack.c.l.b16 %v404
        %v608 = vunpack.c.l.b16 %v405
        %v609 = vunpack.c.l.b16 %v406
        %v610 = vunpack.c.l.b16 %v407
        %v611 = vunpack.c.l.b16 %v408
        %v612 = vunpack.c.l.b16 %v409
        %v613 = vunpack.c.l.b16 %v410
        %v614 = vunpack.c.l.b16 %v411
        %v615 = vunpack.c.l.b16 %v412
        %v616 = vunpack.c.l.b16 %v413
        %v617 = vunpack.c.l.b16 %v414
        %v618 = vunpack.c.l.b16 %v415
        %v619 = vunpack.c.l.b16 %v416
        %v620 = vunpack.c.l.b16 %v417
        %v621 = vunpack.c.l.b16 %v418
        %v622 = vunpack.c.l.b16 %v419
        %v623 = vunpack.c.l.b16 %v420
        %v624 = vunpack.c.l.b16 %v421
        %v625 = vunpack.c.l.b16 %v422
        %v626 = vunpack.c.l.b16 %v423
        %v627 = vunpack.c.l.b16 %v424
        %v628 = vunpack.c.l.b16 %v425
        %v629 = vunpack.c.l.b16 %v426
        %v630 = vunpack.c.l.b16 %v427
        %v631 = vunpack.c.l.b16 %v428
        %v632 = vunpack.c.l.b16 %v429
        %v633 = vunpack.c.l.b16 %v430
        %v634 = vunpack.c.l.b16 %v431
        %v635 = vunpack.c.l.b16 %v432
        %v636 = vunpack.c.l.b16 %v433
        %v637 = vunpack.c.l.b16 %v434
        %v638 = vunpack.c.l.b16 %v435
        %v639 = vunpack.c.l.b16 %v436
        %v640 = vpack.c.b16 %v543, %v542
        %v641 = vpack.c.b16 %v545, %v544
        %v642 = vpack.c.b16 %v547, %v546
        %v643 = vpack.c.b16 %v549, %v548
        %v644 = vpack.c.b16 %v551, %v550
        %v645 = vpack.c.b16 %v553, %v552
        %v646 = vpack.c.b16 %v555, %v554
        %v647 = vpack.c.b16 %v557, %v556
        %v648 = vpack.c.b16 %v559, %v558
        %v649 = vpack.c.b16 %v561, %v560
        %v650 = vpack.c.b16 %v563, %v562
        %v651 = vpack.c.b16 %v565, %v564
        %v652 = vpack.c.b16 %v567, %v566
        %v653 = vpack.c.b16 %v569, %v568
        %v654 = vpack.c.b16 %v571, %v570
        %v655 = vpack.c.b16 %v573, %v572
        %v656 = vpack.c.b16 %v575, %v574
        %v657 = vpack.c.b16 %v577, %v576
        %v658 = vpack.c.b16 %v579, %v578
        %v659 = vpack.c.b16 %v581, %v580
        %v660 = vpack.c.b16 %v583, %v582
        %v661 = vpack.c.b16 %v585, %v584
        %v662 = vpack.c.b16 %v587, %v586
        %v663 = vpack.c.b16 %v589, %v588
        %v664 = vpack.c.b16 %v591, %v590
        %v665 = vpack.c.b16 %v593, %v592
        %v666 = vpack.c.b16 %v595, %v594
        %v667 = vpack.c.b16 %v597, %v596
        %v668 = vpack.c.b16 %v599, %v598
        %v669 = vpack.c.b16 %v601, %v600
        %v670 = vpack.c.b16 %v603, %v602
        %v671 = vpack.c.b16 %v605, %v604
        %v672 = vpack.c.b16 %v607, %v606
        %v673 = vpack.c.b16 %v609, %v608
        %v674 = vpack.c.b16 %v611, %v610
        %v675 = vpack.c.b16 %v613, %v612
        %v676 = vpack.c.b16 %v615, %v614
        %v677 = vpack.c.b16 %v617, %v616
        %v678 = vpack.c.b16 %v619, %v618
        %v679 = vpack.c.b16 %v621, %v620
        %v680 = vpack.c.b16 %v623, %v622
        %v681 = vpack.c.b16 %v625, %v624
        %v682 = vpack.c.b16 %v627, %v626
        %v683 = vpack.c.b16 %v629, %v628
        %v684 = vpack.c.b16 %v631, %v630
        %v685 = vpack.c.b16 %v633, %v632
        %v686 = vpack.c.b16 %v635, %v634
        %v687 = vpack.c.b16 %v637, %v636
        %v688 = vpack.c.b16 %v639, %v638
        %vm738 = vcmask 130048
        %v740 = vsel %vm738, %v338, 0
        %742 = vmatprep.subr.bf16.mxu0 0
        %743 = vmatpush1.bf16.msra.mxu0 %v647
        %744 = vmatprep.subr.bf16.mxu0 0
        %745 = vmatpush1.bf16.msra.mxu0 %v646
        %746 = vmatprep.subr.bf16.mxu0 0
        %747 = vmatpush1.bf16.msra.mxu0 %v645
        %748 = vmatprep.subr.bf16.mxu0 0
        %749 = vmatpush1.bf16.msra.mxu0 %v644
        %750 = vmatprep.subr.bf16.mxu0 0
        %751 = vmatpush1.bf16.msra.mxu0 %v643
        %752 = vmatprep.subr.bf16.mxu0 0
        %753 = vmatpush1.bf16.msra.mxu0 %v642
        %754 = vmatprep.subr.bf16.mxu0 0
        %755 = vmatpush1.bf16.msra.mxu0 %v641
        %756 = vmatprep.subr.bf16.mxu0 0
        %757 = vmatpush1.bf16.msra.mxu0 %v640
        %758 = vmatprep.subr.bf16.mxu0 0
        %759 = vmatpush2.bf16.msra.mxu0 %v655
        %760 = vmatprep.subr.bf16.mxu0 0
        %761 = vmatpush2.bf16.msra.mxu0 %v654
        %762 = vmatprep.subr.bf16.mxu0 0
        %763 = vmatpush2.bf16.msra.mxu0 %v653
        %764 = vmatprep.subr.bf16.mxu0 0
        %765 = vmatpush2.bf16.msra.mxu0 %v652
        %766 = vmatprep.subr.bf16.mxu0 0
        %767 = vmatpush2.bf16.msra.mxu0 %v651
        %768 = vmatprep.subr.bf16.mxu0 0
        %769 = vmatpush2.bf16.msra.mxu0 %v650
        %770 = vmatprep.subr.bf16.mxu0 0
        %771 = vmatpush2.bf16.msra.mxu0 %v649
        %772 = vmatprep.subr.bf16.mxu0 0
        %773 = vmatpush2.bf16.msra.mxu0 %v648
        %774 = vmatprep.mubr.bf16.mxu0 %v333
        %775 = vmatmul.mubr.bf16.gmra.mxu0 %v332
        %v776 = vpop.f32.mrf.mxu0
        %v777 = vadd.f32 %v442, %v776
        %v778 = vpop.f32.mrf.mxu0
        %v779 = vpop.f32.mrf.mxu0
        %v780 = vadd.f32 %v442, %v779
        %v781 = vpop.f32.mrf.mxu0
        %782 = vdwg.mxu0
        %783 = vmatprep.subr.bf16.mxu0 0
        %784 = vmatpush1.bf16.msra.mxu0 %v663
        %785 = vmatprep.subr.bf16.mxu0 0
        %786 = vmatpush1.bf16.msra.mxu0 %v662
        %787 = vmatprep.subr.bf16.mxu0 0
        %788 = vmatpush1.bf16.msra.mxu0 %v661
        %789 = vmatprep.subr.bf16.mxu0 0
        %790 = vmatpush1.bf16.msra.mxu0 %v660
        %791 = vmatprep.subr.bf16.mxu0 0
        %792 = vmatpush1.bf16.msra.mxu0 %v659
        %793 = vmatprep.subr.bf16.mxu0 0
        %794 = vmatpush1.bf16.msra.mxu0 %v658
        %795 = vmatprep.subr.bf16.mxu0 0
        %796 = vmatpush1.bf16.msra.mxu0 %v657
        %797 = vmatprep.subr.bf16.mxu0 0
        %798 = vmatpush1.bf16.msra.mxu0 %v656
        %799 = vmatprep.subr.bf16.mxu0 0
        %800 = vmatpush2.bf16.msra.mxu0 %v671
        %801 = vmatprep.subr.bf16.mxu0 0
        %802 = vmatpush2.bf16.msra.mxu0 %v670
        %803 = vmatprep.subr.bf16.mxu0 0
        %804 = vmatpush2.bf16.msra.mxu0 %v669
        %805 = vmatprep.subr.bf16.mxu0 0
        %806 = vmatpush2.bf16.msra.mxu0 %v668
        %807 = vmatprep.subr.bf16.mxu0 0
        %808 = vmatpush2.bf16.msra.mxu0 %v667
        %809 = vmatprep.subr.bf16.mxu0 0
        %810 = vmatpush2.bf16.msra.mxu0 %v666
        %811 = vmatprep.subr.bf16.mxu0 0
        %812 = vmatpush2.bf16.msra.mxu0 %v665
        %813 = vmatprep.subr.bf16.mxu0 0
        %814 = vmatpush2.bf16.msra.mxu0 %v664
        %815 = vmatprep.mubr.bf16.mxu0 %v335
        %816 = vmatmul.mubr.bf16.gmra.mxu0 %v334
        %v817 = vpop.f32.mrf.mxu0
        %v818 = vadd.f32 %v777, %v817
        %v819 = vpop.f32.mrf.mxu0
        %v820 = vpop.f32.mrf.mxu0
        %v821 = vadd.f32 %v780, %v820
        %v822 = vpop.f32.mrf.mxu0
        %823 = vdwg.mxu0
        %824 = vmatprep.subr.bf16.mxu0 0
        %825 = vmatpush1.bf16.msra.mxu0 %v679
        %826 = vmatprep.subr.bf16.mxu0 0
        %827 = vmatpush1.bf16.msra.mxu0 %v678
        %828 = vmatprep.subr.bf16.mxu0 0
        %829 = vmatpush1.bf16.msra.mxu0 %v677
        %830 = vmatprep.subr.bf16.mxu0 0
        %831 = vmatpush1.bf16.msra.mxu0 %v676
        %832 = vmatprep.subr.bf16.mxu0 0
        %833 = vmatpush1.bf16.msra.mxu0 %v675
        %834 = vmatprep.subr.bf16.mxu0 0
        %835 = vmatpush1.bf16.msra.mxu0 %v674
        %836 = vmatprep.subr.bf16.mxu0 0
        %837 = vmatpush1.bf16.msra.mxu0 %v673
        %838 = vmatprep.subr.bf16.mxu0 0
        %839 = vmatpush1.bf16.msra.mxu0 %v672
        %840 = vmatprep.subr.bf16.mxu0 0
        %841 = vmatpush2.bf16.msra.mxu0 %v687
        %842 = vmatprep.subr.bf16.mxu0 0
        %843 = vmatpush2.bf16.msra.mxu0 %v686
        %844 = vmatprep.subr.bf16.mxu0 0
        %845 = vmatpush2.bf16.msra.mxu0 %v685
        %846 = vmatprep.subr.bf16.mxu0 0
        %847 = vmatpush2.bf16.msra.mxu0 %v684
        %848 = vmatprep.subr.bf16.mxu0 0
        %849 = vmatpush2.bf16.msra.mxu0 %v683
        %850 = vmatprep.subr.bf16.mxu0 0
        %851 = vmatpush2.bf16.msra.mxu0 %v682
        %852 = vmatprep.subr.bf16.mxu0 0
        %853 = vmatpush2.bf16.msra.mxu0 %v681
        %854 = vmatprep.subr.bf16.mxu0 0
        %855 = vmatpush2.bf16.msra.mxu0 %v680
        %856 = vmatprep.mubr.bf16.mxu0 %v337
        %857 = vmatmul.mubr.bf16.gmra.mxu0 %v336
        %v858 = vpop.f32.mrf.mxu0
        %v859 = vadd.f32 %v818, %v858
        %v860 = vpop.f32.mrf.mxu0
        %v861 = vpop.f32.mrf.mxu0
        %v862 = vadd.f32 %v821, %v861
        %v863 = vpop.f32.mrf.mxu0
        %864 = vdwg.mxu0
        %865 = vmatprep.subr.bf16.mxu0 0
        %866 = vmatpush1.bf16.msra.mxu0 0
        %867 = vmatprep.subr.bf16.mxu0 0
        %868 = vmatpush1.bf16.msra.mxu0 0
        %869 = vmatprep.subr.bf16.mxu0 0
        %870 = vmatpush1.bf16.msra.mxu0 0
        %871 = vmatprep.subr.bf16.mxu0 0
        %872 = vmatpush1.bf16.msra.mxu0 0
        %873 = vmatprep.subr.bf16.mxu0 0
        %874 = vmatpush1.bf16.msra.mxu0 0
        %875 = vmatprep.subr.bf16.mxu0 0
        %876 = vmatpush1.bf16.msra.mxu0 0
        %877 = vmatprep.subr.bf16.mxu0 0
        %878 = vmatpush1.bf16.msra.mxu0 0
        %879 = vmatprep.subr.bf16.mxu0 0
        %880 = vmatpush1.bf16.msra.mxu0 %v688
        %881 = vmatprep.subr.bf16.mxu0 0
        %882 = vmatpush2.bf16.msra.mxu0 0
        %883 = vmatprep.subr.bf16.mxu0 0
        %884 = vmatpush2.bf16.msra.mxu0 0
        %885 = vmatprep.subr.bf16.mxu0 0
        %886 = vmatpush2.bf16.msra.mxu0 0
        %887 = vmatprep.subr.bf16.mxu0 0
        %888 = vmatpush2.bf16.msra.mxu0 0
        %889 = vmatprep.subr.bf16.mxu0 0
        %890 = vmatpush2.bf16.msra.mxu0 0
        %891 = vmatprep.subr.bf16.mxu0 0
        %892 = vmatpush2.bf16.msra.mxu0 0
        %893 = vmatprep.subr.bf16.mxu0 0
        %894 = vmatpush2.bf16.msra.mxu0 0
        %895 = vmatprep.subr.bf16.mxu0 0
        %896 = vmatpush2.bf16.msra.mxu0 0
        %897 = vmatprep.mubr.bf16.mxu0 0
        %898 = vmatmul.mubr.bf16.gmra.mxu0 %v740
        %v899 = vpop.f32.mrf.mxu0
        %v900 = vadd.f32 %v859, %v899
        %v901 = vpop.f32.mrf.mxu0
        %v902 = vpop.f32.mrf.mxu0
        %v903 = vadd.f32 %v862, %v902
        %v904 = vpop.f32.mrf.mxu0
        %905 = vdwg.mxu0
        %v906 = vmax.f32 %v900, 0.0
        %v907 = vmax.f32 %v903, 0.0
        %v908 = vpack.c.bf16 %v907, %v906
        %v909 = vld [vmem:[%s3] sm:$0xf]
        %v910 = vld [vmem:[%s3 + $0x4] sm:$0xf]
        %v911 = vld [vmem:[%s3 + $0x8] sm:$0xf]
        %v912 = vld [vmem:[%s3 + $0xc] sm:$0xf]
        %v913 = vld [vmem:[%s3 + $0x10] sm:$0xf]
        %v914 = vld [vmem:[%s3 + $0x14] sm:$0xf]
        %v915 = vld [vmem:[%s3 + $0x18] sm:$0xf]
        %v916 = vld [vmem:[%s3 + $0x1c] sm:$0xf]
        %v917 = vld [vmem:[%s3 + $0x20] sm:$0xf]
        %v918 = vld [vmem:[%s3 + $0x24] sm:$0xf]
        %v919 = vld [vmem:[%s3 + $0x28] sm:$0xf]
        %v920 = vld [vmem:[%s3 + $0x2c] sm:$0xf]
        %v921 = vld [vmem:[%s3 + $0x30] sm:$0xf]
        %v922 = vld [vmem:[%s3 + $0x34] sm:$0xf]
        %v923 = vld [vmem:[%s3 + $0x38] sm:$0xf]
        %v924 = vld [vmem:[%s3 + $0x3c] sm:$0xf]
        %v925 = vld [vmem:[%s4] sm:$0x1]
        %v927 = vlaneseq
        %v928 = vshrl.u32 %v927, 7
        %v929 = vsub.s32 0, %v928
        %v930 = vrot.slane %v925, %v929
        %v948 = vunpack.c.l.b16 %v909
        %v949 = vunpack.c.l.b16 %v910
        %v950 = vunpack.c.l.b16 %v911
        %v951 = vunpack.c.l.b16 %v912
        %v952 = vunpack.c.l.b16 %v913
        %v953 = vunpack.c.l.b16 %v914
        %v954 = vunpack.c.l.b16 %v915
        %v955 = vunpack.c.l.b16 %v916
        %v956 = vunpack.c.l.b16 %v917
        %v957 = vunpack.c.l.b16 %v918
        %v958 = vunpack.c.l.b16 %v919
        %v959 = vunpack.c.l.b16 %v920
        %v960 = vunpack.c.l.b16 %v921
        %v961 = vunpack.c.l.b16 %v922
        %v962 = vunpack.c.l.b16 %v923
        %v963 = vunpack.c.l.b16 %v924
        %v964 = vpack.c.b16 %v949, %v948
        %v965 = vpack.c.b16 %v951, %v950
        %v966 = vpack.c.b16 %v953, %v952
        %v967 = vpack.c.b16 %v955, %v954
        %v968 = vpack.c.b16 %v957, %v956
        %v969 = vpack.c.b16 %v959, %v958
        %v970 = vpack.c.b16 %v961, %v960
        %v971 = vpack.c.b16 %v963, %v962
        %980 = vmatprep.subr.bf16.mxu0 0
        %981 = vmatpush1.bf16.msra.mxu0 %v971
        %982 = vmatprep.subr.bf16.mxu0 0
        %983 = vmatpush1.bf16.msra.mxu0 %v970
        %984 = vmatprep.subr.bf16.mxu0 0
        %985 = vmatpush1.bf16.msra.mxu0 %v969
        %986 = vmatprep.subr.bf16.mxu0 0
        %987 = vmatpush1.bf16.msra.mxu0 %v968
        %988 = vmatprep.subr.bf16.mxu0 0
        %989 = vmatpush1.bf16.msra.mxu0 %v967
        %990 = vmatprep.subr.bf16.mxu0 0
        %991 = vmatpush1.bf16.msra.mxu0 %v966
        %992 = vmatprep.subr.bf16.mxu0 0
        %993 = vmatpush1.bf16.msra.mxu0 %v965
        %994 = vmatprep.subr.bf16.mxu0 0
        %995 = vmatpush1.bf16.msra.mxu0 %v964
        %996 = vmatprep.subr.bf16.mxu0 0
        %997 = vmatpush2.bf16.msra.mxu0 0
        %998 = vmatprep.subr.bf16.mxu0 0
        %999 = vmatpush2.bf16.msra.mxu0 0
        %1000 = vmatprep.subr.bf16.mxu0 0
        %1001 = vmatpush2.bf16.msra.mxu0 0
        %1002 = vmatprep.subr.bf16.mxu0 0
        %1003 = vmatpush2.bf16.msra.mxu0 0
        %1004 = vmatprep.subr.bf16.mxu0 0
        %1005 = vmatpush2.bf16.msra.mxu0 0
        %1006 = vmatprep.subr.bf16.mxu0 0
        %1007 = vmatpush2.bf16.msra.mxu0 0
        %1008 = vmatprep.subr.bf16.mxu0 0
        %1009 = vmatpush2.bf16.msra.mxu0 0
        %1010 = vmatprep.subr.bf16.mxu0 0
        %1011 = vmatpush2.bf16.msra.mxu0 0
        %1012 = vmatprep.mubr.bf16.mxu0 0
        %1013 = vmatmul.mubr.bf16.gmra.mxu0 %v908
        %v1014 = vpop.f32.mrf.mxu0
        %v1015 = vadd.f32 %v930, %v1014
        %v1016 = vpop.f32.mrf.mxu0
        %v1017 = vpop.f32.mrf.mxu0
        %v1018 = vadd.f32 %v930, %v1017
        %v1019 = vpop.f32.mrf.mxu0
        %1020 = vdwg.mxu0
        %v1021 = vmax.f32 %v1015, 0.0
        %v1022 = vmax.f32 %v1018, 0.0
        %v1023 = vpack.c.bf16 %v1022, %v1021
        %v1024 = vld [vmem:[%s5] sm:$0xf]
        %v1025 = vld [vmem:[%s5 + $0x4] sm:$0xf]
        %v1026 = vld [vmem:[%s5 + $0x8] sm:$0xf]
        %v1027 = vld [vmem:[%s5 + $0xc] sm:$0xf]
        %v1028 = vld [vmem:[%s5 + $0x10] sm:$0xf]
        %v1029 = vld [vmem:[%s5 + $0x14] sm:$0xf]
        %v1030 = vld [vmem:[%s5 + $0x18] sm:$0xf]
        %v1031 = vld [vmem:[%s5 + $0x1c] sm:$0xf]
        %v1032 = vld [vmem:[%s5 + $0x20] sm:$0xf]
        %v1033 = vld [vmem:[%s5 + $0x24] sm:$0xf]
        %v1034 = vld [vmem:[%s5 + $0x28] sm:$0xf]
        %v1035 = vld [vmem:[%s5 + $0x2c] sm:$0xf]
        %v1036 = vld [vmem:[%s5 + $0x30] sm:$0xf]
        %v1037 = vld [vmem:[%s5 + $0x34] sm:$0xf]
        %v1038 = vld [vmem:[%s5 + $0x38] sm:$0xf]
        %v1039 = vld [vmem:[%s5 + $0x3c] sm:$0xf]
        %v1040 = vld [vmem:[%s6] sm:$0x1]
        %v1042 = vlaneseq
        %v1043 = vshrl.u32 %v1042, 7
        %v1044 = vsub.s32 0, %v1043
        %v1045 = vrot.slane %v1040, %v1044
        %v1063 = vunpack.c.l.b16 %v1024
        %v1064 = vunpack.c.l.b16 %v1025
        %v1065 = vunpack.c.l.b16 %v1026
        %v1066 = vunpack.c.l.b16 %v1027
        %v1067 = vunpack.c.l.b16 %v1028
        %v1068 = vunpack.c.l.b16 %v1029
        %v1069 = vunpack.c.l.b16 %v1030
        %v1070 = vunpack.c.l.b16 %v1031
        %v1071 = vunpack.c.l.b16 %v1032
        %v1072 = vunpack.c.l.b16 %v1033
        %v1073 = vunpack.c.l.b16 %v1034
        %v1074 = vunpack.c.l.b16 %v1035
        %v1075 = vunpack.c.l.b16 %v1036
        %v1076 = vunpack.c.l.b16 %v1037
        %v1077 = vunpack.c.l.b16 %v1038
        %v1078 = vunpack.c.l.b16 %v1039
        %v1079 = vpack.c.b16 %v1064, %v1063
        %v1080 = vpack.c.b16 %v1066, %v1065
        %v1081 = vpack.c.b16 %v1068, %v1067
        %v1082 = vpack.c.b16 %v1070, %v1069
        %v1083 = vpack.c.b16 %v1072, %v1071
        %v1084 = vpack.c.b16 %v1074, %v1073
        %v1085 = vpack.c.b16 %v1076, %v1075
        %v1086 = vpack.c.b16 %v1078, %v1077
        %1095 = vmatprep.subr.bf16.mxu0 0
        %1096 = vmatpush1.bf16.msra.mxu0 %v1086
        %1097 = vmatprep.subr.bf16.mxu0 0
        %1098 = vmatpush1.bf16.msra.mxu0 %v1085
        %1099 = vmatprep.subr.bf16.mxu0 0
        %1100 = vmatpush1.bf16.msra.mxu0 %v1084
        %1101 = vmatprep.subr.bf16.mxu0 0
        %1102 = vmatpush1.bf16.msra.mxu0 %v1083
        %1103 = vmatprep.subr.bf16.mxu0 0
        %1104 = vmatpush1.bf16.msra.mxu0 %v1082
        %1105 = vmatprep.subr.bf16.mxu0 0
        %1106 = vmatpush1.bf16.msra.mxu0 %v1081
        %1107 = vmatprep.subr.bf16.mxu0 0
        %1108 = vmatpush1.bf16.msra.mxu0 %v1080
        %1109 = vmatprep.subr.bf16.mxu0 0
        %1110 = vmatpush1.bf16.msra.mxu0 %v1079
        %1111 = vmatprep.subr.bf16.mxu0 0
        %1112 = vmatpush2.bf16.msra.mxu0 0
        %1113 = vmatprep.subr.bf16.mxu0 0
        %1114 = vmatpush2.bf16.msra.mxu0 0
        %1115 = vmatprep.subr.bf16.mxu0 0
        %1116 = vmatpush2.bf16.msra.mxu0 0
        %1117 = vmatprep.subr.bf16.mxu0 0
        %1118 = vmatpush2.bf16.msra.mxu0 0
        %1119 = vmatprep.subr.bf16.mxu0 0
        %1120 = vmatpush2.bf16.msra.mxu0 0
        %1121 = vmatprep.subr.bf16.mxu0 0
        %1122 = vmatpush2.bf16.msra.mxu0 0
        %1123 = vmatprep.subr.bf16.mxu0 0
        %1124 = vmatpush2.bf16.msra.mxu0 0
        %1125 = vmatprep.subr.bf16.mxu0 0
        %1126 = vmatpush2.bf16.msra.mxu0 0
        %1127 = vmatprep.mubr.bf16.mxu0 0
        %1128 = vmatmul.mubr.bf16.gmra.mxu0 %v1023
        %v1129 = vpop.f32.mrf.mxu0
        %v1130 = vadd.f32 %v1045, %v1129
        %v1131 = vpop.f32.mrf.mxu0
        %v1132 = vpop.f32.mrf.mxu0
        %v1133 = vadd.f32 %v1045, %v1132
        %v1134 = vpop.f32.mrf.mxu0
        %1135 = vdwg.mxu0
        %v1136 = vsel %vm738, %v1130, -inf
        %1137 = vmax.xlane.f32.xlu0 %v1136
        %v1138 = vpop.xlane.xlu0 %1137
        %v1139 = vsel %vm738, %v1133, -inf
        %1140 = vmax.xlane.f32.xlu0 %v1139
        %v1141 = vpop.xlane.xlu0 %1140
        %v1142 = vsub.f32 %v1130, %v1138
        %v1143 = vsub.f32 %v1133, %v1141
        %v1144 = vmul.f32 %v1142, 1.442695
        %v1145 = vpow.pop %v1144
        %v1146 = vmul.f32 %v1143, 1.442695
        %v1147 = vpow.pop %v1146
        %v1148 = vsel %vm738, %v1145, 0.0
        %1149 = vadd.xlane.f32.xlu0 %v1148
        %v1150 = vpop.xlane.xlu0 %1149
        %v1151 = vsel %vm738, %v1147, 0.0
        %1152 = vadd.xlane.f32.xlu0 %v1151
        %v1153 = vpop.xlane.xlu0 %1152
        %v1154 = vlog2.pop %v1150
        %v1155 = vmul.f32 %v1154, 0.6931472
        %v1156 = vlog2.pop %v1153
        %v1157 = vmul.f32 %v1156, 0.6931472
        %v1158 = vsub.f32 %v1142, %v1155
        %v1159 = vsub.f32 %v1143, %v1157
        %1160 = vst.msk [vmem:[%s315] sm:$0xff] %vm738, %v1158
        %1161 = vst.msk [vmem:[%s315 + $0x8] sm:$0xff] %vm738, %v1159
        %s1162 = smul.u32 2, %s22
        %p1163 = scmp.lt.s32.totalorder %s1162, 3
        %s1164 = scalar_select %p1163, %s1162, 3
        %s1165 = smul.addr %s1164, 8
        %s1166 = scalar_lea.vmem %s7, %s1165
        // Predicated region
        $region57: #{tpu_custom_call.1} parent=47 // pred_check
          %p1167 = pneg %p192
        $region58: #{tpu_custom_call.1} parent=47 // pred_check_branch
          %1169 = sbr.rel (%p1167) target = $region60
        $region59: #{tpu_custom_call.1} parent=47 // pred_region
          %s1170 = smul.u32 2, %s22
        $region60: #{tpu_custom_call.1} parent=47 // pred_fallthru
          _
      $region48: #{tpu_custom_call.1} parent=5 // pred_fallthru
        _
      %p1171 = scmp.le.s32.totalorder 2, %s17
      // Predicated region
      $region61: #{tpu_custom_call.1} parent=5 // pred_check
        %p1172 = pneg %p1171
      $region62: #{tpu_custom_call.1} parent=5 // pred_check_branch
        %1174 = sbr.rel (%p1172) target = $region64
      $region63: #{tpu_custom_call.1} parent=5 // pred_region
        %s1175 = ssub.s32 %s17, 2
        // Predicated region
        $region65: #{tpu_custom_call.1} parent=63 // pred_check
          %p1176 = pneg %p198
        $region66: #{tpu_custom_call.1} parent=63 // pred_check_branch
          %1178 = sbr.rel (%p1176) target = $region68
        $region67: #{tpu_custom_call.1} parent=63 // pred_region
          %s1179 = smul.u32 2, %s23
          %p1180 = scmp.lt.s32.totalorder %s1179, 3
          %s1181 = scalar_select %p1180, %s1179, 3
          %s1182 = smul.addr %s1181, 8
          %s1183 = scalar_lea.vmem %s7, %s1182
        $region68: #{tpu_custom_call.1} parent=63 // pred_fallthru
          _
      $region64: #{tpu_custom_call.1} parent=5 // pred_fallthru
        _
    $region6: #{tpu_custom_call.1} parent=1 // loop_footer
      %s21 = sadd.s32 1, %s17
    $region7: #{tpu_custom_call.1} parent=1 // loop_footer_branch
      %16 = sbr.rel target = $region3
    $region8: #{tpu_custom_call.1} parent=1 // loop_exit
      _
    %1184 = vsyncpa [#allocation3], 1
    %s1185 = scalar_lea.sflag [#allocation3], 1
    %1186 = vsyncpa %s1185, 1
    %1187 = vsyncpa [#allocation5], 1

</llo_original>
